<compile_context>
chip_gen: v5e
topology: v5e:2x2
jax: 0.10.0
libtpu: 0.0.40
codegen_flags: <defaults>
</compile_context>

<pallas_src>
import jax
import jax.numpy as jnp
from jax import lax
from jax.experimental import pallas as pl
from jax.experimental.pallas import tpu as pltpu

HID_DIM = 128
H1 = 64
H2 = 32


def _mlp_logits(h_ref, w1_ref, b1_ref, w2_ref, b2_ref, w3_ref, b3_ref):
    """Transposed-orientation MLP; returns lane-dense logits of shape (1, tm)."""
    h = h_ref[...]                                           # (tm, 128): rows x features

    # Linear(128 -> 64) + ReLU, transposed: features on sublanes, rows on lanes.
    # NT dot_general == W1 @ h^T; lowers to a native transposed-rhs MXU matmul.
    x1 = lax.dot_general(w1_ref[...], h, (((1,), (1,)), ((), ())),
                         preferred_element_type=jnp.float32)
    x1 = jnp.maximum(x1 + b1_ref[...], 0.0)                  # (64, tm)

    # Dropout(0.1): identity in eval mode.

    # Linear(64 -> 32) + ReLU: (32, 64) @ (64, tm) -> (32, tm).
    x2 = jnp.dot(w2_ref[...], x1, preferred_element_type=jnp.float32)
    x2 = jnp.maximum(x2 + b2_ref[...], 0.0)                  # (32, tm)

    # Linear(32 -> 1): VPU multiply + cross-sublane (XLU) reduction, no N=1 MXU matmul.
    return jnp.sum(x2 * w3_ref[...], axis=0, keepdims=True) + b3_ref[0, 0]  # (1, tm)


def _actor_kernel_masked(h_ref, mask_ref, w1_ref, b1_ref, w2_ref, b2_ref, w3_ref,
                         b3_ref, out_ref):
    logits = _mlp_logits(h_ref, w1_ref, b1_ref, w2_ref, b2_ref, w3_ref, b3_ref)
    # masked_fill(~valid_actions_mask, -inf); lane-dense store.
    out_ref[...] = jnp.where(mask_ref[...] > 0.5, logits, -jnp.inf)


def _actor_kernel_unmasked(h_ref, w1_ref, b1_ref, w2_ref, b2_ref, w3_ref, b3_ref,
                           out_ref):
    out_ref[...] = _mlp_logits(h_ref, w1_ref, b1_ref, w2_ref, b2_ref, w3_ref, b3_ref)


def _tensorcores_per_chip():
    """Best-effort TC count: >1 only on chips whose 'parallel' grid axes shard."""
    try:
        kind = jax.devices()[0].device_kind.lower()
    except Exception:
        return 1
    for tag in ("v7", "7x", "v4", "v5p"):
        if tag in kind:
            return 2
    return 1


def actor_forward(h, params, valid_actions_mask=None, *, tm_max=4096):
    """h: (B, N, 128); valid_actions_mask: (B, N) bool or None -> logits (B, N) f32."""
    w1t, b1t, w2t, b2t, w3c, b3 = params
    B, N, D = h.shape
    assert D == HID_DIM
    M = B * N

    # --- Row-tile selection ---------------------------------------------------------
    n_tc = _tensorcores_per_chip()
    num_tiles = pl.cdiv(M, tm_max)
    if n_tc >= 2 and M >= 1024:
        # Multi-TC chips: even tile count so both cores get an equal share of the
        # "parallel" axis.  Single-TC chips never get a forced split (grid is serial).
        num_tiles = max(num_tiles, n_tc)
        num_tiles = pl.cdiv(num_tiles, n_tc) * n_tc
    tm = pl.cdiv(pl.cdiv(M, num_tiles), 128) * 128   # multiple of 128 for lane-dense out
    num_tiles = pl.cdiv(M, tm)                        # re-derive: no empty trailing tiles
    m_pad = num_tiles * tm

    # The big activation tensor is never padded/copied: the reshape is a view and the
    # last h block is a partial block.  Garbage rows only feed the sliced-off tail.
    h2d = h.reshape(M, D)

    h_spec = pl.BlockSpec((tm, HID_DIM), lambda i: (i, 0))      # rows on sublane axis
    out_spec = pl.BlockSpec((1, tm), lambda i: (0, i))          # lane-dense stores
    weight_specs = [
        pl.BlockSpec((H1, HID_DIM), lambda i: (0, 0)),          # W1 (out,in), resident
        pl.BlockSpec((H1, 1), lambda i: (0, 0)),                # b1 column
        pl.BlockSpec((H2, H1), lambda i: (0, 0)),               # W2 (out,in), resident
        pl.BlockSpec((H2, 1), lambda i: (0, 0)),                # b2 column
        pl.BlockSpec((H2, 1), lambda i: (0, 0)),                # w3 column
        pl.BlockSpec(memory_space=pltpu.MemorySpace.SMEM),      # b3 scalar in SMEM
    ]

    # Only kicks in if the caller raises tm_max far beyond the default.
    h_tile_bytes = tm * HID_DIM * h2d.dtype.itemsize
    vmem_est = 2 * h_tile_bytes + 4 * tm * 4 + 256 * 1024
    vmem_limit = int(1.5 * vmem_est) if vmem_est > 12 * 1024 * 1024 else None
    compiler_params = pltpu.CompilerParams(
        dimension_semantics=("parallel",), vmem_limit_bytes=vmem_limit)

    w_bytes = sum(int(p.size) * p.dtype.itemsize for p in (w1t, b1t, w2t, b2t, w3c, b3))
    flops = 2 * M * (HID_DIM * H1 + H1 * H2 + H2)
    h_bytes = M * HID_DIM * h2d.dtype.itemsize

    if valid_actions_mask is None:
        out = pl.pallas_call(
            _actor_kernel_unmasked,
            out_shape=jax.ShapeDtypeStruct((1, m_pad), jnp.float32),
            grid=(num_tiles,),
            in_specs=[h_spec] + weight_specs,
            out_specs=out_spec,
            compiler_params=compiler_params,
            cost_estimate=pl.CostEstimate(flops=flops, transcendentals=0,
                                          bytes_accessed=h_bytes + w_bytes + m_pad * 4),
        )(h2d, w1t, b1t, w2t, b2t, w3c, b3)
    else:
        mask = valid_actions_mask.reshape(M).astype(jnp.float32)
        if m_pad != M:
            mask = jnp.pad(mask, (0, m_pad - M))     # tiny (4 B/row); never pad h
        mask2d = mask.reshape(1, m_pad)
        mask_spec = pl.BlockSpec((1, tm), lambda i: (0, i))
        out = pl.pallas_call(
            _actor_kernel_masked,
            out_shape=jax.ShapeDtypeStruct((1, m_pad), jnp.float32),
            grid=(num_tiles,),
            in_specs=[h_spec, mask_spec] + weight_specs,
            out_specs=out_spec,
            compiler_params=compiler_params,
            cost_estimate=pl.CostEstimate(flops=flops, transcendentals=0,
                                          bytes_accessed=h_bytes + w_bytes + m_pad * 8),
        )(h2d, mask2d, w1t, b1t, w2t, b2t, w3c, b3)

    return out[0, :M].reshape(B, N)


def init_params(key):
    """Deterministic nn.Linear-style init; weights kept in PyTorch (out, in) layout."""
    k1, k2, k3, k4, k5, k6 = jax.random.split(key, 6)

    def linear(kw, kb, fan_in, fan_out):
        bound = 1.0 / (fan_in ** 0.5)
        w = jax.random.uniform(kw, (fan_out, fan_in), jnp.float32, -bound, bound)
        b = jax.random.uniform(kb, (fan_out, 1), jnp.float32, -bound, bound)
        return w, b

    w1t, b1t = linear(k1, k2, HID_DIM, H1)   # (64, 128), (64, 1)
    w2t, b2t = linear(k3, k4, H1, H2)        # (32, 64),  (32, 1)
    w3, b3 = linear(k5, k6, H2, 1)           # (1, 32),   (1, 1)
    w3c = w3.T                                # (32, 1) column for the VPU reduction
    return (w1t, b1t, w2t, b2t, w3c, b3)


def actor_ref(h, params, valid_actions_mask=None):
    """Pure-JAX reference of the PyTorch forward (eval mode)."""
    w1t, b1t, w2t, b2t, w3c, b3 = params
    hi = lax.Precision.HIGHEST
    x = jnp.maximum(jnp.dot(h, w1t.T, precision=hi) + b1t[:, 0], 0.0)
    x = jnp.maximum(jnp.dot(x, w2t.T, precision=hi) + b2t[:, 0], 0.0)
    logits = jnp.dot(x, w3c, precision=hi)[..., 0] + b3[0, 0]
    if valid_actions_mask is not None:
        logits = jnp.where(valid_actions_mask, logits, -jnp.inf)
    return logits


def _check(got, ref):
    finite = jnp.isfinite(ref)
    assert got.shape == ref.shape
    assert bool(jnp.all(jnp.isfinite(got) == finite))
    assert bool(jnp.allclose(jnp.where(finite, got, 0.0),
                             jnp.where(finite, ref, 0.0),
                             atol=1e-4, rtol=1e-4))


if __name__ == "__main__":
    key = jax.random.PRNGKey(0)
    kp, kh1, km1, kh2, kh3, km3 = jax.random.split(key, 6)

    params = init_params(kp)

    # 1) Small masked case: single partial tile, mask path.
    B1, N1 = 2, 8
    h1 = jax.random.normal(kh1, (B1, N1, HID_DIM), dtype=jnp.float32)
    mask1 = jax.random.bernoulli(km1, 0.7, (B1, N1))
    logits1 = jax.block_until_ready(actor_forward(h1, params, mask1))
    _check(logits1, actor_ref(h1, params, mask1))

    # 2) Larger unmasked case: exercises the unmasked kernel variant + large-tile path
    #    (single maximal tile on 1-TC chips, even split on multi-TC chips).
    B2, N2 = 2, 640
    h2 = jax.random.normal(kh2, (B2, N2, HID_DIM), dtype=jnp.float32)
    logits2 = jax.block_until_ready(actor_forward(h2, params, None))
    assert bool(jnp.allclose(logits2, actor_ref(h2, params, None), atol=1e-4, rtol=1e-4))

    # 3) Multi-tile grid with a *partial* final h block (no activation padding), masked.
    B3, N3 = 2, 200
    h3 = jax.random.normal(kh3, (B3, N3, HID_DIM), dtype=jnp.float32)
    mask3 = jax.random.bernoulli(km3, 0.6, (B3, N3))
    logits3 = jax.block_until_ready(actor_forward(h3, params, mask3, tm_max=256))
    _check(logits3, actor_ref(h3, params, mask3))

    print("KERNEL_OK")
</pallas_src>

<mosaic_0001>
module attributes {stable_mosaic.version = 11 : i64} {
  func.func @_actor_kernel_masked(%arg0: i32, %arg1: memref<128x128xf32, #tpu.memory_space<vmem>>, %arg2: memref<1x128xf32, #tpu.memory_space<vmem>>, %arg3: memref<64x128xf32, #tpu.memory_space<vmem>>, %arg4: memref<64x1xf32, #tpu.memory_space<vmem>>, %arg5: memref<32x64xf32, #tpu.memory_space<vmem>>, %arg6: memref<32x1xf32, #tpu.memory_space<vmem>>, %arg7: memref<32x1xf32, #tpu.memory_space<vmem>>, %arg8: memref<1x1xf32, #tpu.memory_space<smem>>, %arg9: memref<1x128xf32, #tpu.memory_space<vmem>>) attributes {dimension_semantics = [#tpu.dimension_semantics<parallel>], iteration_bounds = array<i64: 1>, scalar_prefetch = 0 : i64, scratch_operands = 0 : i64, tpu.core_type = #tpu.core_type<tc>, window_params = [{transform_indices = @transform_0, window_bounds = array<i64: 128, 128>}, {transform_indices = @transform_1, window_bounds = array<i64: 1, 128>}, {pipeline_mode = #tpu.pipeline_mode<synchronous>, transform_indices = @transform_2, window_bounds = array<i64: 64, 128>}, {pipeline_mode = #tpu.pipeline_mode<synchronous>, transform_indices = @transform_3, window_bounds = array<i64: 64, 1>}, {pipeline_mode = #tpu.pipeline_mode<synchronous>, transform_indices = @transform_4, window_bounds = array<i64: 32, 64>}, {pipeline_mode = #tpu.pipeline_mode<synchronous>, transform_indices = @transform_5, window_bounds = array<i64: 32, 1>}, {pipeline_mode = #tpu.pipeline_mode<synchronous>, transform_indices = @transform_6, window_bounds = array<i64: 32, 1>}, {transform_indices = @transform_7, window_bounds = array<i64: 1, 1>}, {transform_indices = @transform_8, window_bounds = array<i64: 1, 128>}]} {
    %c0 = arith.constant 0 : index
    %c0_0 = arith.constant 0 : index
    %0 = vector.load %arg1[%c0, %c0_0] : memref<128x128xf32, #tpu.memory_space<vmem>>, vector<128x128xf32>
    %c0_1 = arith.constant 0 : index
    %c0_2 = arith.constant 0 : index
    %1 = vector.load %arg3[%c0_1, %c0_2] : memref<64x128xf32, #tpu.memory_space<vmem>>, vector<64x128xf32>
    %cst = arith.constant dense<0.000000e+00> : vector<64x128xf32>
    %2 = tpu.matmul %1, %0, %cst {dimension_numbers = #tpu.dot_dimension_numbers<[1], [1], [0], [0], [0, 0, 1, 0], [], []>} : vector<64x128xf32>, vector<128x128xf32>, vector<64x128xf32> -> vector<64x128xf32>
    %c0_3 = arith.constant 0 : index
    %c0_4 = arith.constant 0 : index
    %3 = vector.load %arg4[%c0_3, %c0_4] : memref<64x1xf32, #tpu.memory_space<vmem>>, vector<64x1xf32>
    %4 = vector.broadcast %3 : vector<64x1xf32> to vector<64x128xf32>
    %5 = arith.addf %2, %4 : vector<64x128xf32>
    %cst_5 = arith.constant 0.000000e+00 : f32
    %6 = vector.broadcast %cst_5 : f32 to vector<64x128xf32>
    %7 = arith.maximumf %5, %6 : vector<64x128xf32>
    %c0_6 = arith.constant 0 : index
    %c0_7 = arith.constant 0 : index
    %8 = vector.load %arg5[%c0_6, %c0_7] : memref<32x64xf32, #tpu.memory_space<vmem>>, vector<32x64xf32>
    %cst_8 = arith.constant dense<0.000000e+00> : vector<32x128xf32>
    %9 = tpu.matmul %8, %7, %cst_8 {dimension_numbers = #tpu.dot_dimension_numbers<[1], [0], [0], [1], [0, 0, 1, 1], [], []>} : vector<32x64xf32>, vector<64x128xf32>, vector<32x128xf32> -> vector<32x128xf32>
    %c0_9 = arith.constant 0 : index
    %c0_10 = arith.constant 0 : index
    %10 = vector.load %arg6[%c0_9, %c0_10] : memref<32x1xf32, #tpu.memory_space<vmem>>, vector<32x1xf32>
    %11 = vector.broadcast %10 : vector<32x1xf32> to vector<32x128xf32>
    %12 = arith.addf %9, %11 : vector<32x128xf32>
    %cst_11 = arith.constant 0.000000e+00 : f32
    %13 = vector.broadcast %cst_11 : f32 to vector<32x128xf32>
    %14 = arith.maximumf %12, %13 : vector<32x128xf32>
    %c0_12 = arith.constant 0 : index
    %c0_13 = arith.constant 0 : index
    %15 = vector.load %arg7[%c0_12, %c0_13] : memref<32x1xf32, #tpu.memory_space<vmem>>, vector<32x1xf32>
    %16 = vector.broadcast %15 : vector<32x1xf32> to vector<32x128xf32>
    %17 = arith.mulf %14, %16 : vector<32x128xf32>
    %cst_14 = arith.constant dense<0.000000e+00> : vector<128xf32>
    %18 = vector.multi_reduction <add>, %17, %cst_14 [0] : vector<32x128xf32> to vector<128xf32>
    %19 = vector.shape_cast %18 : vector<128xf32> to vector<1x128xf32>
    %c0_15 = arith.constant 0 : index
    %c0_16 = arith.constant 0 : index
    %20 = memref.load %arg8[%c0_15, %c0_16] : memref<1x1xf32, #tpu.memory_space<smem>>
    %21 = vector.broadcast %20 : f32 to vector<1x128xf32>
    %22 = arith.addf %19, %21 : vector<1x128xf32>
    %c0_17 = arith.constant 0 : index
    %c0_18 = arith.constant 0 : index
    %23 = vector.load %arg2[%c0_17, %c0_18] : memref<1x128xf32, #tpu.memory_space<vmem>>, vector<1x128xf32>
    %cst_19 = arith.constant 5.000000e-01 : f32
    %24 = vector.broadcast %cst_19 : f32 to vector<1x128xf32>
    %25 = arith.cmpf ogt, %23, %24 : vector<1x128xf32>
    %cst_20 = arith.constant 0xFF800000 : f32
    %26 = vector.broadcast %cst_20 : f32 to vector<1x128xf32>
    %27 = arith.select %25, %22, %26 : vector<1x128xi1>, vector<1x128xf32>
    %c0_21 = arith.constant 0 : index
    %c0_22 = arith.constant 0 : index
    %28 = vector.load %arg9[%c0_21, %c0_22] : memref<1x128xf32, #tpu.memory_space<vmem>>, vector<1x128xf32>
    tpu.vector_store %arg9[%c0_21, %c0_22], %27 {strides = array<i32>} : memref<1x128xf32, #tpu.memory_space<vmem>>, vector<1x128xf32>,
    return
  }
  func.func @transform_0(%arg0: i32) -> (i32, i32) {
    %c0_i32 = arith.constant 0 : i32
    %c0_i32_0 = arith.constant 0 : i32
    return %arg0, %c0_i32 : i32, i32
  }
  func.func @transform_1(%arg0: i32) -> (i32, i32) {
    %c0_i32 = arith.constant 0 : i32
    %c0_i32_0 = arith.constant 0 : i32
    return %c0_i32, %arg0 : i32, i32
  }
  func.func @transform_2(%arg0: i32) -> (i32, i32) {
    %c0_i32 = arith.constant 0 : i32
    %c0_i32_0 = arith.constant 0 : i32
    %c0_i32_1 = arith.constant 0 : i32
    return %c0_i32, %c0_i32_0 : i32, i32
  }
  func.func @transform_3(%arg0: i32) -> (i32, i32) {
    %c0_i32 = arith.constant 0 : i32
    %c0_i32_0 = arith.constant 0 : i32
    %c0_i32_1 = arith.constant 0 : i32
    return %c0_i32, %c0_i32_0 : i32, i32
  }
  func.func @transform_4(%arg0: i32) -> (i32, i32) {
    %c0_i32 = arith.constant 0 : i32
    %c0_i32_0 = arith.constant 0 : i32
    %c0_i32_1 = arith.constant 0 : i32
    return %c0_i32, %c0_i32_0 : i32, i32
  }
  func.func @transform_5(%arg0: i32) -> (i32, i32) {
    %c0_i32 = arith.constant 0 : i32
    %c0_i32_0 = arith.constant 0 : i32
    %c0_i32_1 = arith.constant 0 : i32
    return %c0_i32, %c0_i32_0 : i32, i32
  }
  func.func @transform_6(%arg0: i32) -> (i32, i32) {
    %c0_i32 = arith.constant 0 : i32
    %c0_i32_0 = arith.constant 0 : i32
    %c0_i32_1 = arith.constant 0 : i32
    return %c0_i32, %c0_i32_0 : i32, i32
  }
  func.func @transform_7(%arg0: i32) -> (i32, i32) {
    %c0_i32 = arith.constant 0 : i32
    %c0_i32_0 = arith.constant 0 : i32
    %c0_i32_1 = arith.constant 0 : i32
    return %c0_i32, %c0_i32_0 : i32, i32
  }
  func.func @transform_8(%arg0: i32) -> (i32, i32) {
    %c0_i32 = arith.constant 0 : i32
    %c0_i32_0 = arith.constant 0 : i32
    return %c0_i32, %arg0 : i32, i32
  }
}

</mosaic_0001>

<llo_original>
// kernel: tpu_custom_call.1
$region0: #{tpu_custom_call.1}
  #allocation0 [shape = 'u32[]', space=smem, size = 0x4, offset = 0x4, fixed_abs, tag = 'smem constant byte address 0x4 - core index']
  #allocation1 [shape = 'u32[72,128]{1,0:T(1,128)}', space=vmem, size = 0x9000, scoped, tag = 'internal scratch']
  #allocation2 [shape = 'f32[1,1]{1,0:T(1,128)S(6)}', space=smem, size = 0x200, scoped, tag = 'scoped memory for tpu_custom_call.1']
  %s0 = inlined_call_operand.vmem [shape: f32[16,128], index: 0, kind: input, shape index: {}]
  %s1 = inlined_call_operand.vmem [shape: f32[1,128], index: 1, kind: input, shape index: {}]
  %s2 = inlined_call_operand.vmem [shape: f32[64,128], index: 2, kind: input, shape index: {}]
  %s3 = inlined_call_operand.vmem [shape: f32[64,1], index: 3, kind: input, shape index: {}]
  %s4 = inlined_call_operand.vmem [shape: f32[32,64], index: 4, kind: input, shape index: {}]
  %s5 = inlined_call_operand.vmem [shape: f32[32,1], index: 5, kind: input, shape index: {}]
  %s6 = inlined_call_operand.vmem [shape: f32[32,1], index: 6, kind: input, shape index: {}]
  %s7 = inlined_call_operand.<no memory space> [shape: f32[1,1], index: 7, kind: input, shape index: {}]
  %s8 = inlined_call_operand.hbm [shape: f32[1,128], index: 8, kind: output, shape index: {}]
  %s9 = sld [smem:[#allocation0]]
  $region42: #{tpu_custom_call.1} parent=0
    _
  %s11 = ssub.s32 1, %s9
  %s12 = scalar_select 0, %s11, %s9
  %13 = sst [smem:[#allocation2]] %s7
  $region1: #{tpu_custom_call.1} parent=0
    #allocation3 [shape = 'u8[512]{0}', space=vmem, size = 0x400, scoped, tag = 'output window, operand 0, single buffered']
    #allocation4 [shape = 's32[1]{0}', space=sflag, size = 0x4, scoped, tag = 'scoped memory for tpu_custom_call.1']
    %14 = vsyncpa [#allocation4], 0
    // Predicated region
    $region2: #{tpu_custom_call.1} parent=1 // pred_check
      _
    $region3: #{tpu_custom_call.1} parent=1 // pred_check_branch
      %16 = sbr.rel (0) target = $region5
    $region4: #{tpu_custom_call.1} parent=1 // pred_region
      _
    $region5: #{tpu_custom_call.1} parent=1 // pred_fallthru
      _
    // Predicated region
    $region6: #{tpu_custom_call.1} parent=1 // pred_check
      _
    $region7: #{tpu_custom_call.1} parent=1 // pred_check_branch
      %18 = sbr.rel (0) target = $region9
    $region8: #{tpu_custom_call.1} parent=1 // pred_region
      _
    $region9: #{tpu_custom_call.1} parent=1 // pred_fallthru
      _
    // Predicated region
    $region10: #{tpu_custom_call.1} parent=1 // pred_check
      _
    $region11: #{tpu_custom_call.1} parent=1 // pred_check_branch
      %20 = sbr.rel (0) target = $region13
    $region12: #{tpu_custom_call.1} parent=1 // pred_region
      _
    $region13: #{tpu_custom_call.1} parent=1 // pred_fallthru
      _
    // Predicated region
    $region14: #{tpu_custom_call.1} parent=1 // pred_check
      _
    $region15: #{tpu_custom_call.1} parent=1 // pred_check_branch
      %22 = sbr.rel (0) target = $region17
    $region16: #{tpu_custom_call.1} parent=1 // pred_region
      _
    $region17: #{tpu_custom_call.1} parent=1 // pred_fallthru
      _
    // Predicated region
    $region18: #{tpu_custom_call.1} parent=1 // pred_check
      _
    $region19: #{tpu_custom_call.1} parent=1 // pred_check_branch
      %24 = sbr.rel (0) target = $region21
    $region20: #{tpu_custom_call.1} parent=1 // pred_region
      _
    $region21: #{tpu_custom_call.1} parent=1 // pred_fallthru
      _
    // Predicated region
    $region22: #{tpu_custom_call.1} parent=1 // pred_check
      _
    $region23: #{tpu_custom_call.1} parent=1 // pred_check_branch
      %26 = sbr.rel (0) target = $region25
    $region24: #{tpu_custom_call.1} parent=1 // pred_region
      _
    $region25: #{tpu_custom_call.1} parent=1 // pred_fallthru
      _
    // Predicated region
    $region26: #{tpu_custom_call.1} parent=1 // pred_check
      _
    $region27: #{tpu_custom_call.1} parent=1 // pred_check_branch
      %28 = sbr.rel (0) target = $region29
    $region28: #{tpu_custom_call.1} parent=1 // pred_region
      _
    $region29: #{tpu_custom_call.1} parent=1 // pred_fallthru
      _
    // Predicated region
    $region30: #{tpu_custom_call.1} parent=1 // pred_check
      _
    $region31: #{tpu_custom_call.1} parent=1 // pred_check_branch
      %30 = sbr.rel (0) target = $region33
    $region32: #{tpu_custom_call.1} parent=1 // pred_region
      _
    $region33: #{tpu_custom_call.1} parent=1 // pred_fallthru
      _
    %v31 = vld [vmem:[%s0] sm:$0xff]
    %v32 = vld [vmem:[%s0 + $0x8] sm:$0xff]
    %v33 = vld [vmem:[%s0 + $0x10] sm:$0xff]
    %v34 = vld [vmem:[%s0 + $0x18] sm:$0xff]
    %v35 = vld [vmem:[%s0 + $0x20] sm:$0xff]
    %v36 = vld [vmem:[%s0 + $0x28] sm:$0xff]
    %v37 = vld [vmem:[%s0 + $0x30] sm:$0xff]
    %v38 = vld [vmem:[%s0 + $0x38] sm:$0xff]
    %v39 = vld [vmem:[%s0 + $0x40] sm:$0xff]
    %v40 = vld [vmem:[%s0 + $0x48] sm:$0xff]
    %v41 = vld [vmem:[%s0 + $0x50] sm:$0xff]
    %v42 = vld [vmem:[%s0 + $0x58] sm:$0xff]
    %v43 = vld [vmem:[%s0 + $0x60] sm:$0xff]
    %v44 = vld [vmem:[%s0 + $0x68] sm:$0xff]
    %v45 = vld [vmem:[%s0 + $0x70] sm:$0xff]
    %v46 = vld [vmem:[%s0 + $0x78] sm:$0xff]
    %v47 = vld [vmem:[%s2] sm:$0xff]
    %v48 = vld [vmem:[%s2 + $0x8] sm:$0xff]
    %v49 = vld [vmem:[%s2 + $0x10] sm:$0xff]
    %v50 = vld [vmem:[%s2 + $0x18] sm:$0xff]
    %v51 = vld [vmem:[%s2 + $0x20] sm:$0xff]
    %v52 = vld [vmem:[%s2 + $0x28] sm:$0xff]
    %v53 = vld [vmem:[%s2 + $0x30] sm:$0xff]
    %v54 = vld [vmem:[%s2 + $0x38] sm:$0xff]
    %v55 = vld [vmem:[%s3] sm:$0xff]
    %v56 = vld [vmem:[%s3 + $0x8] sm:$0xff]
    %v57 = vld [vmem:[%s3 + $0x10] sm:$0xff]
    %v58 = vld [vmem:[%s3 + $0x18] sm:$0xff]
    %v59 = vld [vmem:[%s3 + $0x20] sm:$0xff]
    %v60 = vld [vmem:[%s3 + $0x28] sm:$0xff]
    %v61 = vld [vmem:[%s3 + $0x30] sm:$0xff]
    %v62 = vld [vmem:[%s3 + $0x38] sm:$0xff]
    %64 = vset.pattern.permute.xlu0 0
    %65 = vperm.xlu0 %64, %v55
    %v66 = vpop.permute.xlu0 %65
    %69 = vset.pattern.permute.xlu0 0
    %70 = vperm.xlu0 %69, %v56
    %v71 = vpop.permute.xlu0 %70
    %74 = vset.pattern.permute.xlu0 0
    %75 = vperm.xlu0 %74, %v57
    %v76 = vpop.permute.xlu0 %75
    %79 = vset.pattern.permute.xlu0 0
    %80 = vperm.xlu0 %79, %v58
    %v81 = vpop.permute.xlu0 %80
    %84 = vset.pattern.permute.xlu0 0
    %85 = vperm.xlu0 %84, %v59
    %v86 = vpop.permute.xlu0 %85
    %89 = vset.pattern.permute.xlu0 0
    %90 = vperm.xlu0 %89, %v60
    %v91 = vpop.permute.xlu0 %90
    %94 = vset.pattern.permute.xlu0 0
    %95 = vperm.xlu0 %94, %v61
    %v96 = vpop.permute.xlu0 %95
    %99 = vset.pattern.permute.xlu0 0
    %100 = vperm.xlu0 %99, %v62
    %v101 = vpop.permute.xlu0 %100
    %103 = vmatpush.xpose.msra.mxu0 %v46
    %104 = vmatpush.xpose.msra.mxu0 %v45
    %105 = vmatpush.xpose.msra.mxu0 %v44
    %106 = vmatpush.xpose.msra.mxu0 %v43
    %107 = vmatpush.xpose.msra.mxu0 %v42
    %108 = vmatpush.xpose.msra.mxu0 %v41
    %109 = vmatpush.xpose.msra.mxu0 %v40
    %110 = vmatpush.xpose.msra.mxu0 %v39
    %111 = vmatpush.xpose.msra.mxu0 %v38
    %112 = vmatpush.xpose.msra.mxu0 %v37
    %113 = vmatpush.xpose.msra.mxu0 %v36
    %114 = vmatpush.xpose.msra.mxu0 %v35
    %115 = vmatpush.xpose.msra.mxu0 %v34
    %116 = vmatpush.xpose.msra.mxu0 %v33
    %117 = vmatpush.xpose.msra.mxu0 %v32
    %118 = vmatpush.xpose.msra.mxu0 %v31
    %119 = vmatmul.f32.gmra.mxu0 %v47
    %v120 = vpop.f32.mrf.mxu0
    %v121 = vadd.f32 %v66, %v120
    %122 = vmatmul.f32.gmra.mxu0 %v48
    %v123 = vpop.f32.mrf.mxu0
    %v124 = vadd.f32 %v71, %v123
    %125 = vmatmul.f32.gmra.mxu0 %v49
    %v126 = vpop.f32.mrf.mxu0
    %v127 = vadd.f32 %v76, %v126
    %128 = vmatmul.f32.gmra.mxu0 %v50
    %v129 = vpop.f32.mrf.mxu0
    %v130 = vadd.f32 %v81, %v129
    %131 = vmatmul.f32.gmra.mxu0 %v51
    %v132 = vpop.f32.mrf.mxu0
    %v133 = vadd.f32 %v86, %v132
    %134 = vmatmul.f32.gmra.mxu0 %v52
    %v135 = vpop.f32.mrf.mxu0
    %v136 = vadd.f32 %v91, %v135
    %137 = vmatmul.f32.gmra.mxu0 %v53
    %v138 = vpop.f32.mrf.mxu0
    %v139 = vadd.f32 %v96, %v138
    %140 = vmatmul.f32.gmra.mxu0 %v54
    %v141 = vpop.f32.mrf.mxu0
    %v142 = vadd.f32 %v101, %v141
    %143 = vdwg.mxu0
    %v144 = vmax.f32 %v121, 0.0
    %v145 = vmax.f32 %v124, 0.0
    %v146 = vmax.f32 %v127, 0.0
    %v147 = vmax.f32 %v130, 0.0
    %v148 = vmax.f32 %v133, 0.0
    %v149 = vmax.f32 %v136, 0.0
    %v150 = vmax.f32 %v139, 0.0
    %v151 = vmax.f32 %v142, 0.0
    %v152 = vld [vmem:[%s4] sm:$0xff]
    %v153 = vld [vmem:[%s4 + $0x8] sm:$0xff]
    %v154 = vld [vmem:[%s4 + $0x10] sm:$0xff]
    %v155 = vld [vmem:[%s4 + $0x18] sm:$0xff]
    %v156 = vld [vmem:[%s5] sm:$0xff]
    %v157 = vld [vmem:[%s5 + $0x8] sm:$0xff]
    %v158 = vld [vmem:[%s5 + $0x10] sm:$0xff]
    %v159 = vld [vmem:[%s5 + $0x18] sm:$0xff]
    %161 = vset.pattern.permute.xlu0 0
    %162 = vperm.xlu0 %161, %v156
    %v163 = vpop.permute.xlu0 %162
    %166 = vset.pattern.permute.xlu0 0
    %167 = vperm.xlu0 %166, %v157
    %v168 = vpop.permute.xlu0 %167
    %171 = vset.pattern.permute.xlu0 0
    %172 = vperm.xlu0 %171, %v158
    %v173 = vpop.permute.xlu0 %172
    %176 = vset.pattern.permute.xlu0 0
    %177 = vperm.xlu0 %176, %v159
    %v178 = vpop.permute.xlu0 %177
    %vm180 = vcmask 523264
    %v182 = vsel %vm180, %v152, 0
    %v185 = vsel %vm180, %v153, 0
    %v188 = vsel %vm180, %v154, 0
    %v191 = vsel %vm180, %v155, 0
    %193 = vmatpush.msra.mxu0 0.0
    %194 = vmatpush.msra.mxu0 0.0
    %195 = vmatpush.msra.mxu0 0.0
    %196 = vmatpush.msra.mxu0 0.0
    %197 = vmatpush.msra.mxu0 0.0
    %198 = vmatpush.msra.mxu0 0.0
    %199 = vmatpush.msra.mxu0 0.0
    %200 = vmatpush.msra.mxu0 0.0
    %201 = vmatpush.msra.mxu0 %v151
    %202 = vmatpush.msra.mxu0 %v150
    %203 = vmatpush.msra.mxu0 %v149
    %204 = vmatpush.msra.mxu0 %v148
    %205 = vmatpush.msra.mxu0 %v147
    %206 = vmatpush.msra.mxu0 %v146
    %207 = vmatpush.msra.mxu0 %v145
    %208 = vmatpush.msra.mxu0 %v144
    %209 = vmatmul.f32.gmra.mxu0 %v182
    %v210 = vpop.f32.mrf.mxu0
    %v211 = vadd.f32 %v163, %v210
    %212 = vmatmul.f32.gmra.mxu0 %v185
    %v213 = vpop.f32.mrf.mxu0
    %v214 = vadd.f32 %v168, %v213
    %215 = vmatmul.f32.gmra.mxu0 %v188
    %v216 = vpop.f32.mrf.mxu0
    %v217 = vadd.f32 %v173, %v216
    %218 = vmatmul.f32.gmra.mxu0 %v191
    %v219 = vpop.f32.mrf.mxu0
    %v220 = vadd.f32 %v178, %v219
    %221 = vdwg.mxu0
    %v222 = vmax.f32 %v211, 0.0
    %v223 = vmax.f32 %v214, 0.0
    %v224 = vmax.f32 %v217, 0.0
    %v225 = vmax.f32 %v220, 0.0
    %v226 = vld [vmem:[%s6] sm:$0xff]
    %v227 = vld [vmem:[%s6 + $0x8] sm:$0xff]
    %v228 = vld [vmem:[%s6 + $0x10] sm:$0xff]
    %v229 = vld [vmem:[%s6 + $0x18] sm:$0xff]
    %231 = vset.pattern.permute.xlu0 0
    %232 = vperm.xlu0 %231, %v226
    %v233 = vpop.permute.xlu0 %232
    %236 = vset.pattern.permute.xlu0 0
    %237 = vperm.xlu0 %236, %v227
    %v238 = vpop.permute.xlu0 %237
    %241 = vset.pattern.permute.xlu0 0
    %242 = vperm.xlu0 %241, %v228
    %v243 = vpop.permute.xlu0 %242
    %246 = vset.pattern.permute.xlu0 0
    %247 = vperm.xlu0 %246, %v229
    %v248 = vpop.permute.xlu0 %247
    %v250 = vmul.f32 %v222, %v233
    %v251 = vmul.f32 %v223, %v238
    %v252 = vmul.f32 %v224, %v243
    %v253 = vmul.f32 %v225, %v248
    %v254 = vadd.f32 %v250, %v251
    %v255 = vadd.f32 %v254, %v252
    %v256 = vadd.f32 %v255, %v253
    %v257 = vrot.slane %v256, 4
    %v258 = vadd.f32 %v256, %v257
    %v259 = vrot.slane %v258, 2
    %v260 = vadd.f32 %v258, %v259
    %v261 = vrot.slane %v260, 1
    %v262 = vadd.f32 %v260, %v261
    %s263 = sld [smem:[#allocation2]]
    %v264 = vstv %s263
    %v265 = vadd.f32 %v262, %v264
    %v266 = vld [vmem:[%s1] sm:$0x1]
    %vm267 = vcmp.gt.f32.partialorder %v266, 0.5
    %v268 = vsel %vm267, %v265, -inf
    %269 = vst [vmem:[#allocation3] sm:$0x1] %v268
    // Predicated region
    $region34: #{tpu_custom_call.1} parent=1 // pred_check
      _
    $region35: #{tpu_custom_call.1} parent=1 // pred_check_branch
      %271 = sbr.rel (0) target = $region37
    $region36: #{tpu_custom_call.1} parent=1 // pred_region
      %273 = vsyncadd [#allocation4], 0
      %s275 = sshll.u32 [#allocation3], 4
      %s276 = int_to_ptr.vmem [resolvable:$true] %s275
      %s277 = sshll.u32 %s8, 4
      %s278 = int_to_ptr.hbm [resolvable:$true] %s277
      %280 = dma.vmem_to_hbm [thread:$0]  %s276, 16, %s278, [#allocation4]
    $region37: #{tpu_custom_call.1} parent=1 // pred_fallthru
      _
    // Predicated region
    $region38: #{tpu_custom_call.1} parent=1 // pred_check
      _
    $region39: #{tpu_custom_call.1} parent=1 // pred_check_branch
      %282 = sbr.rel (0) target = $region41
    $region40: #{tpu_custom_call.1} parent=1 // pred_region
      %284 = dma.done [#allocation4], 16
    $region41: #{tpu_custom_call.1} parent=1 // pred_fallthru
      _
    %285 = vsyncpa [#allocation4], 1

</llo_original>
